<compile_context>
chip_gen: v6e
topology: v6e:2x2x1
jax: 0.10.0
libtpu: 0.0.40
codegen_flags: <defaults>
</compile_context>

<pallas_src>
import jax
import jax.numpy as jnp
from jax import lax
from jax.experimental import pallas as pl
from jax.experimental.pallas import tpu as pltpu


EPS = 1e-5  # torch.nn.LayerNorm default

# Keep the table resident in VMEM if it is below this size (conservative so
# that double-buffering + output blocks still fit comfortably on every
# generation, including v7x's smaller 64 MiB VMEM).
_RESIDENT_TABLE_BYTES_MAX = 10 * 1024 * 1024


def _layernorm_affine(x_f32, affine_ref):
    """LayerNorm over the last axis of a (T, C) f32 tile with a (2, C) affine."""
    mean = jnp.mean(x_f32, axis=-1, keepdims=True)
    centered = x_f32 - mean
    var = jnp.mean(centered * centered, axis=-1, keepdims=True)  # biased (torch)
    y = centered * lax.rsqrt(var + EPS)
    gamma = affine_ref[0:1, :].astype(jnp.float32)   # (1, C)
    beta = affine_ref[1:2, :].astype(jnp.float32)    # (1, C)
    return y * gamma + beta


def _ln_resident_kernel(idx_ref, params_ref, affine_ref, out_ref):
    # idx_ref:    (N_pad,) int32 flat indices in SMEM (scalar prefetch).
    # params_ref: (S*L, T, C) -- the WHOLE table, resident in VMEM.
    # affine_ref: (2, C) -- row 0 = gamma, row 1 = beta.
    # out_ref:    (K, T, C) output block for this grid step.
    i = pl.program_id(0)
    k_per_step = out_ref.shape[0]
    for j in range(k_per_step):  # static unroll; K is small
        flat = idx_ref[i * k_per_step + j]
        x = params_ref[flat].astype(jnp.float32)          # (T, C) dynamic row select
        out_ref[j] = _layernorm_affine(x, affine_ref).astype(out_ref.dtype)


def _ln_gather_kernel(idx_ref, params_ref, affine_ref, out_ref):
    # params_ref: (1, T, C) tile gathered by the scalar-prefetched index_map.
    del idx_ref  # only used by the index_maps
    x = params_ref[0].astype(jnp.float32)                 # (T, C)
    out_ref[0] = _layernorm_affine(x, affine_ref).astype(out_ref.dtype)


def _call_resident(params_flat, affine, idx_flat, *, lookups_per_step, out_dtype):
    SL, T, C = params_flat.shape
    N = int(idx_flat.shape[0])
    K = max(1, min(int(lookups_per_step), N))
    n_blocks = -(-N // K)
    N_pad = n_blocks * K
    if N_pad != N:
        idx_flat = jnp.pad(idx_flat, (0, N_pad - N))  # flat index 0 is always valid

    table_bytes = SL * T * C * jnp.dtype(params_flat.dtype).itemsize
    out_bytes = K * T * C * jnp.dtype(out_dtype).itemsize
    # Table (double-buffered) + output blocks + affine + slack; floor at 16 MiB.
    vmem_limit = int(max(16 * 1024 * 1024,
                         2 * table_bytes + 2 * out_bytes + 2 * (2 * C * 4) + (2 << 20)))

    grid_spec = pltpu.PrefetchScalarGridSpec(
        num_scalar_prefetch=1,
        grid=(n_blocks,),
        in_specs=[
            # Whole table as one full-extent block, constant index_map -> DMA'd once.
            pl.BlockSpec((SL, T, C), lambda i, idx_ref: (0, 0, 0)),
            # gamma/beta packed: same block every step.
            pl.BlockSpec((2, C), lambda i, idx_ref: (0, 0)),
        ],
        out_specs=pl.BlockSpec((K, T, C), lambda i, idx_ref: (i, 0, 0)),
    )
    out = pl.pallas_call(
        _ln_resident_kernel,
        out_shape=jax.ShapeDtypeStruct((N_pad, T, C), out_dtype),
        grid_spec=grid_spec,
        compiler_params=pltpu.CompilerParams(
            dimension_semantics=("parallel",),
            vmem_limit_bytes=vmem_limit,
        ),
    )(idx_flat, params_flat, affine)
    return out[:N] if N_pad != N else out


def _call_gather(params_flat, affine, idx_flat, *, out_dtype):
    SL, T, C = params_flat.shape
    N = int(idx_flat.shape[0])
    grid_spec = pltpu.PrefetchScalarGridSpec(
        num_scalar_prefetch=1,
        grid=(N,),
        in_specs=[
            # Per-lookup (1, T, C) gather; deeper buffering hides the tiny-DMA
            # issue latency that depth-2 double buffering cannot.
            pl.BlockSpec((1, T, C), lambda i, idx_ref: (idx_ref[i], 0, 0),
                         pipeline_mode=pl.Buffered(3)),
            pl.BlockSpec((2, C), lambda i, idx_ref: (0, 0)),
        ],
        out_specs=pl.BlockSpec((1, T, C), lambda i, idx_ref: (i, 0, 0)),
    )
    return pl.pallas_call(
        _ln_gather_kernel,
        out_shape=jax.ShapeDtypeStruct((N, T, C), out_dtype),
        grid_spec=grid_spec,
        compiler_params=pltpu.CompilerParams(
            dimension_semantics=("parallel",),
        ),
    )(idx_flat, params_flat, affine)


def learned_normed_pseudo_instruction_batched(params, affine, idx_subject, idx_label,
                                              *, lookups_per_step=8,
                                              force_gather=False):
    """Batched lookups.

    params:     (S, L, T, C) stacked instruction tables (channels last).
    affine:     (2, C) -- row 0 = LayerNorm weight (gamma), row 1 = bias (beta).
    idx_subject, idx_label: (N,) integer arrays.
    Returns (N, T, C) = LayerNorm(params[idx_subject[n], idx_label[n]]).
    """
    S, L, T, C = params.shape
    params_flat = params.reshape(S * L, T, C)
    # Clamp so a bad index can never drive an out-of-bounds access.
    idx_s = jnp.clip(jnp.asarray(idx_subject, jnp.int32), 0, S - 1)
    idx_l = jnp.clip(jnp.asarray(idx_label, jnp.int32), 0, L - 1)
    idx_flat = idx_s * L + idx_l  # flat (subject, label) index

    table_bytes = params_flat.size * jnp.dtype(params.dtype).itemsize
    if force_gather or table_bytes > _RESIDENT_TABLE_BYTES_MAX:
        return _call_gather(params_flat, affine, idx_flat, out_dtype=params.dtype)
    return _call_resident(params_flat, affine, idx_flat,
                          lookups_per_step=lookups_per_step, out_dtype=params.dtype)


def learned_normed_pseudo_instruction(params, affine, idx_subject, idx_label):
    """Module-equivalent forward(idx_subject, idx_label) -> (T, C).

    NOTE: for an isolated N=1 production call, a plain jnp gather + LayerNorm
    (XLA-fused) beats any custom call; this routes through the Pallas kernel so
    the kernel path is what gets exercised and validated here.
    """
    idx_s = jnp.asarray([idx_subject], jnp.int32)
    idx_l = jnp.asarray([idx_label], jnp.int32)
    return learned_normed_pseudo_instruction_batched(params, affine, idx_s, idx_l)[0]


def _xavier_uniform_stack(key, S, L, T, C, dtype=jnp.float32):
    # Matches torch.nn.init.xavier_uniform_ on an (L, T, C) tensor:
    #   fan_in = T * C, fan_out = L * C, bound = gain * sqrt(6 / (fan_in + fan_out))
    gain = 1.0  # calculate_gain('linear')
    fan_in = T * C
    fan_out = L * C
    bound = gain * (6.0 / (fan_in + fan_out)) ** 0.5
    return jax.random.uniform(key, (S, L, T, C), dtype=dtype,
                              minval=-bound, maxval=bound)


def _reference(params, gamma, beta, idx_subject, idx_label):
    x = params[idx_subject, idx_label].astype(jnp.float32)
    mean = jnp.mean(x, axis=-1, keepdims=True)
    var = jnp.mean((x - mean) ** 2, axis=-1, keepdims=True)
    y = (x - mean) / jnp.sqrt(var + EPS)
    return y * gamma[None, :] + beta[None, :]


if __name__ == "__main__":
    # Small shapes consistent with the module
    # (instruction_pool_size_subjects=3, instruction_pool_size_labels=4,
    #  tokens_per_instruction=8, instruction_channels=128).
    S, L, T, C = 3, 4, 8, 128

    key = jax.random.PRNGKey(0)
    params = _xavier_uniform_stack(key, S, L, T, C)
    # LayerNorm(elementwise_affine=True) default init: weight=1, bias=0.
    gamma = jnp.ones((C,), dtype=jnp.float32)
    beta = jnp.zeros((C,), dtype=jnp.float32)
    affine = jnp.stack([gamma, beta], axis=0)  # (2, C), built once

    # --- single-lookup API (module-equivalent forward) ---
    out = learned_normed_pseudo_instruction(params, affine, 2, 1)
    out = jax.block_until_ready(out)
    assert out.shape == (T, C)
    assert bool(jnp.allclose(out, _reference(params, gamma, beta, 2, 1),
                             atol=1e-5, rtol=1e-5)), "single-lookup mismatch"

    # --- batched API, resident-table path, N not a multiple of K ---
    idx_s = jnp.array([0, 2, 1, 2, 0, 1, 2, 0, 1, 1], dtype=jnp.int32)  # N = 10
    idx_l = jnp.array([0, 1, 3, 2, 3, 0, 0, 1, 2, 3], dtype=jnp.int32)
    out_b = learned_normed_pseudo_instruction_batched(
        params, affine, idx_s, idx_l, lookups_per_step=8)
    out_b = jax.block_until_ready(out_b)
    assert out_b.shape == (idx_s.shape[0], T, C)
    for n in range(idx_s.shape[0]):
        ref_n = _reference(params, gamma, beta, int(idx_s[n]), int(idx_l[n]))
        assert bool(jnp.allclose(out_b[n], ref_n, atol=1e-5, rtol=1e-5)), \
            f"resident-path mismatch at lookup {n}"

    # --- gather fallback path (used when the table is too large for VMEM) ---
    out_g = learned_normed_pseudo_instruction_batched(
        params, affine, idx_s[:5], idx_l[:5], force_gather=True)
    out_g = jax.block_until_ready(out_g)
    assert out_g.shape == (5, T, C)
    for n in range(5):
        ref_n = _reference(params, gamma, beta, int(idx_s[n]), int(idx_l[n]))
        assert bool(jnp.allclose(out_g[n], ref_n, atol=1e-5, rtol=1e-5)), \
            f"gather-path mismatch at lookup {n}"

    print("KERNEL_OK")
</pallas_src>

<mosaic_0001>
module attributes {stable_mosaic.version = 11 : i64} {
  func.func @_ln_resident_kernel(%arg0: i32, %arg1: memref<1xi32, #tpu.memory_space<smem>>, %arg2: memref<12x8x128xf32, #tpu.memory_space<vmem>>, %arg3: memref<2x128xf32, #tpu.memory_space<vmem>>, %arg4: memref<1x8x128xf32, #tpu.memory_space<vmem>>) attributes {dimension_semantics = [#tpu.dimension_semantics<parallel>], iteration_bounds = array<i64: 1>, scalar_prefetch = 1 : i64, scratch_operands = 0 : i64, tpu.core_type = #tpu.core_type<tc>, window_params = [{pipeline_mode = #tpu.pipeline_mode<synchronous>, transform_indices = @transform_0, window_bounds = array<i64: 12, 8, 128>}, {pipeline_mode = #tpu.pipeline_mode<synchronous>, transform_indices = @transform_1, window_bounds = array<i64: 2, 128>}, {transform_indices = @transform_2, window_bounds = array<i64: 1, 8, 128>}]} {
    %c1_i32 = arith.constant 1 : i32
    %0 = arith.muli %arg0, %c1_i32 : i32
    %c0_i32 = arith.constant 0 : i32
    %1 = arith.addi %0, %c0_i32 : i32
    %2 = arith.index_cast %1 : i32 to index
    %3 = memref.load %arg1[%2] : memref<1xi32, #tpu.memory_space<smem>>
    %4 = arith.index_cast %3 : i32 to index
    %c0 = arith.constant 0 : index
    %c0_0 = arith.constant 0 : index
    %5 = vector.load %arg2[%4, %c0, %c0_0] : memref<12x8x128xf32, #tpu.memory_space<vmem>>, vector<1x8x128xf32>
    %6 = vector.shape_cast %5 : vector<1x8x128xf32> to vector<8x128xf32>
    %cst = arith.constant dense<0.000000e+00> : vector<8xf32>
    %7 = vector.multi_reduction <add>, %6, %cst [1] : vector<8x128xf32> to vector<8xf32>
    %8 = vector.shape_cast %7 : vector<8xf32> to vector<8x1xf32>
    %cst_1 = arith.constant 1.280000e+02 : f32
    %9 = vector.broadcast %cst_1 : f32 to vector<8x1xf32>
    %10 = arith.divf %8, %9 : vector<8x1xf32>
    %11 = vector.broadcast %10 : vector<8x1xf32> to vector<8x128xf32>
    %12 = arith.subf %6, %11 : vector<8x128xf32>
    %13 = arith.mulf %12, %12 : vector<8x128xf32>
    %cst_2 = arith.constant dense<0.000000e+00> : vector<8xf32>
    %14 = vector.multi_reduction <add>, %13, %cst_2 [1] : vector<8x128xf32> to vector<8xf32>
    %15 = vector.shape_cast %14 : vector<8xf32> to vector<8x1xf32>
    %cst_3 = arith.constant 1.280000e+02 : f32
    %16 = vector.broadcast %cst_3 : f32 to vector<8x1xf32>
    %17 = arith.divf %15, %16 : vector<8x1xf32>
    %cst_4 = arith.constant 9.99999974E-6 : f32
    %18 = vector.broadcast %cst_4 : f32 to vector<8x1xf32>
    %19 = arith.addf %17, %18 : vector<8x1xf32>
    %20 = math.rsqrt %19 : vector<8x1xf32>
    %21 = vector.broadcast %20 : vector<8x1xf32> to vector<8x128xf32>
    %22 = arith.mulf %12, %21 : vector<8x128xf32>
    %c0_5 = arith.constant 0 : index
    %c0_6 = arith.constant 0 : index
    %23 = vector.load %arg3[%c0_5, %c0_6] : memref<2x128xf32, #tpu.memory_space<vmem>>, vector<1x128xf32>
    %c1 = arith.constant 1 : index
    %c0_7 = arith.constant 0 : index
    %24 = vector.load %arg3[%c1, %c0_7] : memref<2x128xf32, #tpu.memory_space<vmem>>, vector<1x128xf32>
    %25 = vector.broadcast %23 : vector<1x128xf32> to vector<8x128xf32>
    %26 = arith.mulf %22, %25 : vector<8x128xf32>
    %27 = vector.broadcast %24 : vector<1x128xf32> to vector<8x128xf32>
    %28 = arith.addf %26, %27 : vector<8x128xf32>
    %c0_8 = arith.constant 0 : index
    %c0_9 = arith.constant 0 : index
    %c0_10 = arith.constant 0 : index
    %29 = vector.load %arg4[%c0_8, %c0_9, %c0_10] : memref<1x8x128xf32, #tpu.memory_space<vmem>>, vector<1x8x128xf32>
    %30 = vector.shape_cast %29 : vector<1x8x128xf32> to vector<8x128xf32>
    %31 = vector.shape_cast %28 : vector<8x128xf32> to vector<1x8x128xf32>
    tpu.vector_store %arg4[%c0_8, %c0_9, %c0_10], %31 {strides = array<i32>} : memref<1x8x128xf32, #tpu.memory_space<vmem>>, vector<1x8x128xf32>,
    return
  }
  func.func @transform_0(%arg0: i32, %arg1: memref<1xi32, #tpu.memory_space<smem>>) -> (i32, i32, i32) {
    %c0_i32 = arith.constant 0 : i32
    %c0_i32_0 = arith.constant 0 : i32
    %c0_i32_1 = arith.constant 0 : i32
    %c0_i32_2 = arith.constant 0 : i32
    return %c0_i32, %c0_i32_0, %c0_i32_1 : i32, i32, i32
  }
  func.func @transform_1(%arg0: i32, %arg1: memref<1xi32, #tpu.memory_space<smem>>) -> (i32, i32) {
    %c0_i32 = arith.constant 0 : i32
    %c0_i32_0 = arith.constant 0 : i32
    %c0_i32_1 = arith.constant 0 : i32
    return %c0_i32, %c0_i32_0 : i32, i32
  }
  func.func @transform_2(%arg0: i32, %arg1: memref<1xi32, #tpu.memory_space<smem>>) -> (i32, i32, i32) {
    %c0_i32 = arith.constant 0 : i32
    %c0_i32_0 = arith.constant 0 : i32
    %c0_i32_1 = arith.constant 0 : i32
    return %arg0, %c0_i32, %c0_i32_0 : i32, i32, i32
  }
}

</mosaic_0001>

<llo_original>
// kernel: tpu_custom_call.1
$region0: #{tpu_custom_call.1}
  #allocation0 [shape = 'u32[]', space=smem, size = 0x4, offset = 0x4, fixed_abs, tag = 'smem constant byte address 0x4 - core index']
  #allocation1 [shape = 'u32[144,128]{1,0:T(1,128)}', space=vmem, size = 0x12000, scoped, tag = 'internal scratch']
  #allocation2 [shape = 's32[1]{0}', space=sflag, size = 0x4, scoped, tag = 'scoped memory for tpu_custom_call.1']
  #allocation3 [shape = 's32[1]{0:T(128)S(6)}', space=smem, size = 0x200, scoped, tag = 'prefetched SMEM operand 0']
  %s0 = inlined_call_operand.<no memory space> [shape: s32[1], index: 0, kind: input, shape index: {}]
  %s1 = inlined_call_operand.hbm [shape: f32[12,8,128], index: 1, kind: input, shape index: {}]
  %s2 = inlined_call_operand.vmem [shape: f32[2,128], index: 2, kind: input, shape index: {}]
  %s3 = inlined_call_operand.hbm [shape: f32[1,8,128], index: 3, kind: output, shape index: {}]
  %s4 = sld [smem:[#allocation0]]
  $region22: #{tpu_custom_call.1} parent=0
    _
  %s6 = ssub.s32 1, %s4
  %s7 = scalar_select 0, %s6, %s4
  %8 = sst [smem:[#allocation3]] %s0
  $region1: #{tpu_custom_call.1} parent=0
    #allocation4 [shape = 'u8[49152]{0}', space=vmem, size = 0xc000, scoped, tag = 'input window, operand 1, single buffered']
    #allocation5 [shape = 's32[1]{0}', space=sflag, size = 0x4, scoped, tag = 'scoped memory for tpu_custom_call.1']
    #allocation6 [shape = 's32[1]{0}', space=sflag, size = 0x4, scoped, tag = 'scoped memory for tpu_custom_call.1']
    #allocation7 [shape = 'u8[4096]{0}', space=vmem, size = 0x1000, scoped, tag = 'output window, operand 0, single buffered']
    %9 = vsyncpa [#allocation5], 0
    %10 = vsyncpa [#allocation6], 0
    // Predicated region
    $region2: #{tpu_custom_call.1} parent=1 // pred_check
      _
    $region3: #{tpu_custom_call.1} parent=1 // pred_check_branch
      %12 = sbr.rel (0) target = $region5
    $region4: #{tpu_custom_call.1} parent=1 // pred_region
      %s14 = ssub.s32 1536, 1536
      %15 = vsyncadd [#allocation5], %s14
      %s16 = sshll.u32 [#allocation4], 4
      %s17 = int_to_ptr.vmem [resolvable:$true] %s16
      %22 = dma.hbm_to_vmem [thread:$0]  %s1, 1536, %s17, [#allocation5], 128, 128, 8
    $region5: #{tpu_custom_call.1} parent=1 // pred_fallthru
      _
    // Predicated region
    $region6: #{tpu_custom_call.1} parent=1 // pred_check
      _
    $region7: #{tpu_custom_call.1} parent=1 // pred_check_branch
      %24 = sbr.rel (0) target = $region9
    $region8: #{tpu_custom_call.1} parent=1 // pred_region
      _
    $region9: #{tpu_custom_call.1} parent=1 // pred_fallthru
      _
    // Predicated region
    $region10: #{tpu_custom_call.1} parent=1 // pred_check
      _
    $region11: #{tpu_custom_call.1} parent=1 // pred_check_branch
      %26 = sbr.rel (0) target = $region13
    $region12: #{tpu_custom_call.1} parent=1 // pred_region
      %27 = dma.done [#allocation5], 1536
    $region13: #{tpu_custom_call.1} parent=1 // pred_fallthru
      _
    %s28 = sld [smem:[#allocation3]]
    %s29 = smul.u32 %s28, 8
    %s30 = scalar_lea.vmem [#allocation4], %s29
    %v31 = vld [vmem:[%s30] sm:$0xff]
    %32 = vadd.xlane.f32.xlu0 %v31
    %v33 = vpop.xlane.xlu0 %32
    %v34 = vrcp.pop 128.0
    %v35 = vmul.f32 %v33, %v34
    %v36 = vsub.f32 %v31, %v35
    %v37 = vmul.f32 %v36, %v36
    %38 = vadd.xlane.f32.xlu0 %v37
    %v39 = vpop.xlane.xlu0 %38
    %v40 = vmul.f32 %v39, %v34
    %v41 = vadd.f32 %v40, 1e-05
    %v42 = vrsqrt.pop %v41
    %v43 = vmul.f32 %v36, %v42
    %v44 = vld [vmem:[%s2] sm:$0x1]
    %v45 = vld [vmem:[%s2 + $0x1] sm:$0x1]
    %v46 = vlaneseq
    %v47 = vshrl.u32 %v46, 7
    %v48 = vsub.s32 0, %v47
    %v49 = vrot.slane %v44, %v48
    %v50 = vmul.f32 %v43, %v49
    %v51 = vlaneseq
    %v52 = vshrl.u32 %v51, 7
    %v53 = vsub.s32 0, %v52
    %v54 = vrot.slane %v45, %v53
    %v55 = vadd.f32 %v50, %v54
    %56 = vst [vmem:[#allocation7] sm:$0xff] %v55
    // Predicated region
    $region14: #{tpu_custom_call.1} parent=1 // pred_check
      _
    $region15: #{tpu_custom_call.1} parent=1 // pred_check_branch
      %58 = sbr.rel (0) target = $region17
    $region16: #{tpu_custom_call.1} parent=1 // pred_region
      %s60 = ssub.s32 128, 128
      %61 = vsyncadd [#allocation6], %s60
      %s63 = sshll.u32 [#allocation7], 4
      %s64 = int_to_ptr.vmem [resolvable:$true] %s63
      %66 = dma.vmem_to_hbm [thread:$0]  %s64, 128, %s3, [#allocation6]
    $region17: #{tpu_custom_call.1} parent=1 // pred_fallthru
      _
    // Predicated region
    $region18: #{tpu_custom_call.1} parent=1 // pred_check
      _
    $region19: #{tpu_custom_call.1} parent=1 // pred_check_branch
      %68 = sbr.rel (0) target = $region21
    $region20: #{tpu_custom_call.1} parent=1 // pred_region
      %69 = dma.done [#allocation6], 128
    $region21: #{tpu_custom_call.1} parent=1 // pred_fallthru
      _
    %70 = vsyncpa [#allocation5], 1
    %71 = vsyncpa [#allocation6], 1

</llo_original>
